<compile_context>
chip_gen: v7x
topology: tpu7x:2x2x1
jax: 0.10.0
libtpu: 0.0.40
codegen_flags: <defaults>
</compile_context>

<pallas_src>
import functools

import jax
import jax.numpy as jnp
from jax.experimental import pallas as pl
from jax.experimental.pallas import tpu as pltpu

_LANE = 128


def _round_up(x, m):
  return ((x + m - 1) // m) * m


# ---------------------------------------------------------------------------
# Kernel
# ---------------------------------------------------------------------------
def _critic_kernel(*refs, num_hidden_layers):
  """Fused MLP critic, computed transposed ("batch on lanes").

  refs layout:
    x_ref   [in_pad, TB]  bf16   (concat(obs, action)^T, feature axis padded to 128)
    w1      [H, in_pad]   bf16
    b1      [H, 1]        f32
    (w_h    [H, H] bf16, b_h [H, 1] f32) * (num_hidden_layers - 1)
    w_out   [1, H]        bf16
    b_out   [1, 1]        f32
    out_ref [1, TB]       f32    (one Q value per batch column)
  """
  x_ref = refs[0]
  w1_ref, b1_ref = refs[1], refs[2]
  w_out_ref, b_out_ref = refs[-3], refs[-2]
  out_ref = refs[-1]
  hidden_refs = refs[3:-3]

  # Layer 1: single lane-dense K=128 dot (concat + pad done once in the wrapper).
  h = jnp.dot(w1_ref[...], x_ref[...],
              preferred_element_type=jnp.float32) + b1_ref[...]
  h = jnp.maximum(h, 0.0)

  # Remaining hidden layers (statically unrolled).
  for li in range(num_hidden_layers - 1):
    w_ref = hidden_refs[2 * li]
    b_ref = hidden_refs[2 * li + 1]
    h = jnp.dot(w_ref[...], h.astype(jnp.bfloat16),
                preferred_element_type=jnp.float32) + b_ref[...]
    h = jnp.maximum(h, 0.0)

  # Output head lands directly on the lane axis as a (1, TB) row.
  out_ref[...] = (jnp.dot(w_out_ref[...], h.astype(jnp.bfloat16),
                          preferred_element_type=jnp.float32) + b_out_ref[...])


# ---------------------------------------------------------------------------
# Wrapper helpers
# ---------------------------------------------------------------------------
def _choose_tile(batch, block_b):
  """Lane-axis batch tile: multiple of 128, and >=2 grid steps when possible."""
  b_pad = _round_up(max(batch, 1), _LANE)
  tb = min(max(_LANE, _round_up(block_b, _LANE)), b_pad)
  if b_pad >= 2 * _LANE and b_pad // tb < 2:
    # Split into at least two grid steps so v7x's two TensorCores both get work.
    tb = _round_up(pl.cdiv(b_pad, 2), _LANE)
  b_pad = _round_up(b_pad, tb)
  return tb, b_pad


def _vmem_limit_bytes(kernel_ops, in_pad, tb, hidden_dim, single_buffer_weights):
  """Size the scoped-VMEM limit from actual buffers instead of a blanket value."""
  wbuf = 1 if single_buffer_weights else 2
  weight_bytes = sum(int(p.size) * p.dtype.itemsize for p in kernel_ops) * wbuf
  in_tile = in_pad * tb * 2 * 2                  # bf16 x^T tile, double-buffered
  out_tile = 8 * tb * 4 * 2                      # (1,TB) f32 row (padded sublanes), 2 bufs
  act = hidden_dim * tb * (4 + 4 + 2)            # live f32 h + next h + bf16 recast
  total = weight_bytes + in_tile + out_tile + act
  total = int(total * 1.5) + (2 << 20)           # headroom + Mosaic internal scratch
  return max(4 << 20, min(total, 64 << 20))


def _pallas_critic(x_t, kernel_ops, *, tb, b_pad, in_pad, hidden_depth,
                   hidden_dim, single_buffer_weights):
  weight_kwargs = {}
  if single_buffer_weights:
    # Constant-index_map blocks don't need double buffering; halve their VMEM.
    weight_kwargs = dict(pipeline_mode=pl.Buffered(1))

  in_specs = [pl.BlockSpec((in_pad, tb), lambda i: (0, i))]
  for p in kernel_ops:
    in_specs.append(pl.BlockSpec(p.shape, lambda i: (0, 0), **weight_kwargs))
  out_specs = pl.BlockSpec((1, tb), lambda i: (0, i))

  flops = 2 * b_pad * (in_pad * hidden_dim
                       + (hidden_depth - 1) * hidden_dim * hidden_dim
                       + hidden_dim)
  bytes_accessed = (int(x_t.size) * x_t.dtype.itemsize
                    + sum(int(p.size) * p.dtype.itemsize for p in kernel_ops)
                    + b_pad * 4)

  return pl.pallas_call(
      functools.partial(_critic_kernel, num_hidden_layers=hidden_depth),
      out_shape=jax.ShapeDtypeStruct((1, b_pad), jnp.float32),
      grid=(b_pad // tb,),
      in_specs=in_specs,
      out_specs=out_specs,
      compiler_params=pltpu.CompilerParams(
          dimension_semantics=("parallel",),
          vmem_limit_bytes=_vmem_limit_bytes(
              kernel_ops, in_pad, tb, hidden_dim, single_buffer_weights),
      ),
      cost_estimate=pl.CostEstimate(
          flops=int(flops), transcendentals=0,
          bytes_accessed=int(bytes_accessed)),
  )(x_t, *kernel_ops)


def pack_kernel_params(params, in_dim, lane=_LANE):
  """Repack torch-layout f32 params ([out, in] weights) for the transposed kernel.

  Weights stay in torch [out, in] layout (the kernel computes W @ x^T); layer-1's
  input axis is zero-padded to a lane-dense multiple of 128; weights are bf16 and
  biases are f32 columns [out, 1].
  """
  in_pad = _round_up(in_dim, lane)
  w1, b1 = params[0]
  hidden_dim = w1.shape[0]

  w1p = jnp.zeros((hidden_dim, in_pad), jnp.float32).at[:, :in_dim].set(w1)
  ops = [w1p.astype(jnp.bfloat16),
         jnp.asarray(b1, jnp.float32).reshape(-1, 1)]
  for w, b in params[1:-1]:
    ops.append(jnp.asarray(w, jnp.bfloat16))                     # [H, H]
    ops.append(jnp.asarray(b, jnp.float32).reshape(-1, 1))       # [H, 1]
  w_out, b_out = params[-1]
  ops.append(jnp.asarray(w_out, jnp.bfloat16))                   # [1, H]
  ops.append(jnp.asarray(b_out, jnp.float32).reshape(1, 1))      # [1, 1]
  return tuple(ops), in_pad


def critic_forward(obs, action, params, *, block_b=1024, use_pallas=None,
                   single_buffer_weights=True):
  """Q(obs, action) -> [B, 1] float32 (PyTorch Critic.forward semantics)."""
  assert obs.shape[0] == action.shape[0]
  batch, obs_dim = obs.shape
  action_dim = action.shape[1]
  in_dim = obs_dim + action_dim
  hidden_depth = len(params) - 1
  # TODO(synk): hidden_depth == 0 (single Linear trunk) is not kernelized.
  assert hidden_depth >= 1
  hidden_dim = params[0][0].shape[0]

  if use_pallas is None:
    # Tiny problems are pallas_call-overhead bound; let XLA fuse the dot chain.
    use_pallas = (batch >= 128) and (hidden_dim > 64)
  if not use_pallas:
    return reference_forward(obs, action, params)

  kernel_ops, in_pad = pack_kernel_params(params, in_dim)
  tb, b_pad = _choose_tile(batch, block_b)

  x = jnp.concatenate([obs, action], axis=-1)
  x = jnp.pad(x, ((0, b_pad - batch), (0, in_pad - in_dim)))
  x_t = jnp.transpose(x.astype(jnp.bfloat16))          # [in_pad, B_pad], batch on lanes

  try:
    q_row = _pallas_critic(x_t, kernel_ops, tb=tb, b_pad=b_pad, in_pad=in_pad,
                           hidden_depth=hidden_depth, hidden_dim=hidden_dim,
                           single_buffer_weights=single_buffer_weights)
  except Exception:
    if not single_buffer_weights:
      raise
    # Fallback if this JAX build rejects pl.Buffered(1) single-buffering.
    q_row = _pallas_critic(x_t, kernel_ops, tb=tb, b_pad=b_pad, in_pad=in_pad,
                           hidden_depth=hidden_depth, hidden_dim=hidden_dim,
                           single_buffer_weights=False)

  return q_row[:, :batch].T                            # [B, 1]


# ---------------------------------------------------------------------------
# Parameter construction (mimics nn.init.orthogonal_ + zero bias) and reference
# ---------------------------------------------------------------------------
def _orthogonal(key, out_dim, in_dim):
  """Deterministic orthogonal init mimicking nn.init.orthogonal_ on [out, in]."""
  a = jax.random.normal(key, (max(out_dim, in_dim), min(out_dim, in_dim)),
                        dtype=jnp.float32)
  q, r = jnp.linalg.qr(a)
  q = q * jnp.sign(jnp.diagonal(r))[None, :]
  w = q.T if out_dim < in_dim else q
  return w[:out_dim, :in_dim]


def make_params(key, obs_dim, action_dim, hidden_dim, hidden_depth):
  """f32 params in PyTorch layout: list of (w [out, in], b [out]) per Linear."""
  assert hidden_depth >= 1
  dims = [(hidden_dim, obs_dim + action_dim)]
  for _ in range(hidden_depth - 1):
    dims.append((hidden_dim, hidden_dim))
  dims.append((1, hidden_dim))
  keys = jax.random.split(key, len(dims))
  params = []
  for k, (out_d, in_d) in zip(keys, dims):
    w = _orthogonal(k, out_d, in_d)
    b = jnp.zeros((out_d,), jnp.float32)
    params.append((w, b))
  return params


def reference_forward(obs, action, params):
  """Pure-JAX f32 reference of Critic.forward (PyTorch semantics)."""
  x = jnp.concatenate([obs, action], axis=-1)
  for (w, b) in params[:-1]:
    x = jnp.maximum(x @ w.T + b, 0.0)
  w, b = params[-1]
  return x @ w.T + b


if __name__ == "__main__":
  key = jax.random.PRNGKey(0)

  # --- Small shapes consistent with the module (force the Pallas path). ---
  B, obs_dim, action_dim, hidden_dim, hidden_depth = 8, 32, 4, 32, 2
  k_obs, k_act, k_par, k_big = jax.random.split(key, 4)
  obs = jax.random.normal(k_obs, (B, obs_dim), dtype=jnp.float32)
  action = jax.random.normal(k_act, (B, action_dim), dtype=jnp.float32)
  params = make_params(k_par, obs_dim, action_dim, hidden_dim, hidden_depth)

  q = jax.block_until_ready(critic_forward(obs, action, params, use_pallas=True))
  q_ref = reference_forward(obs, action, params)
  assert q.shape == (B, 1), q.shape
  # bf16 matmuls (f32 accumulation) vs the f32 reference: loosened tolerance.
  assert jnp.allclose(q, q_ref, atol=5e-2, rtol=5e-2), float(jnp.max(jnp.abs(q - q_ref)))

  # Tiny-problem fast path (plain XLA) matches the f32 reference exactly.
  q_fast = critic_forward(obs, action, params)          # auto -> XLA path at this size
  assert jnp.allclose(q_fast, q_ref, atol=1e-5, rtol=1e-5)

  # --- More realistic SAC shapes (auto -> Pallas, >= 2 grid steps / megacore). ---
  B2, H2 = 512, 256
  ko, ka, kp = jax.random.split(k_big, 3)
  obs2 = jax.random.normal(ko, (B2, obs_dim), dtype=jnp.float32)
  act2 = jax.random.normal(ka, (B2, action_dim), dtype=jnp.float32)
  params2 = make_params(kp, obs_dim, action_dim, H2, hidden_depth)
  q2 = jax.block_until_ready(critic_forward(obs2, act2, params2))
  q2_ref = reference_forward(obs2, act2, params2)
  assert q2.shape == (B2, 1)
  assert jnp.allclose(q2, q2_ref, atol=1e-1, rtol=1e-1), float(jnp.max(jnp.abs(q2 - q2_ref)))

  print("KERNEL_OK")
</pallas_src>

<mosaic_0001>
module attributes {stable_mosaic.version = 11 : i64} {
  func.func @_critic_kernel(%arg0: i32, %arg1: memref<128x128xbf16, #tpu.memory_space<vmem>>, %arg2: memref<32x128xbf16, #tpu.memory_space<vmem>>, %arg3: memref<32x1xf32, #tpu.memory_space<vmem>>, %arg4: memref<32x32xbf16, #tpu.memory_space<vmem>>, %arg5: memref<32x1xf32, #tpu.memory_space<vmem>>, %arg6: memref<1x32xbf16, #tpu.memory_space<vmem>>, %arg7: memref<1x1xf32, #tpu.memory_space<vmem>>, %arg8: memref<1x128xf32, #tpu.memory_space<vmem>>) attributes {dimension_semantics = [#tpu.dimension_semantics<parallel>], iteration_bounds = array<i64: 1>, scalar_prefetch = 0 : i64, scratch_operands = 0 : i64, tpu.core_type = #tpu.core_type<tc>, window_params = [{transform_indices = @transform_0, window_bounds = array<i64: 128, 128>}, {pipeline_mode = #tpu.pipeline_mode<synchronous>, transform_indices = @transform_1, window_bounds = array<i64: 32, 128>}, {pipeline_mode = #tpu.pipeline_mode<synchronous>, transform_indices = @transform_2, window_bounds = array<i64: 32, 1>}, {pipeline_mode = #tpu.pipeline_mode<synchronous>, transform_indices = @transform_3, window_bounds = array<i64: 32, 32>}, {pipeline_mode = #tpu.pipeline_mode<synchronous>, transform_indices = @transform_4, window_bounds = array<i64: 32, 1>}, {pipeline_mode = #tpu.pipeline_mode<synchronous>, transform_indices = @transform_5, window_bounds = array<i64: 1, 32>}, {pipeline_mode = #tpu.pipeline_mode<synchronous>, transform_indices = @transform_6, window_bounds = array<i64: 1, 1>}, {transform_indices = @transform_7, window_bounds = array<i64: 1, 128>}]} {
    %c0 = arith.constant 0 : index
    %c0_0 = arith.constant 0 : index
    %0 = vector.load %arg2[%c0, %c0_0] : memref<32x128xbf16, #tpu.memory_space<vmem>>, vector<32x128xbf16>
    %c0_1 = arith.constant 0 : index
    %c0_2 = arith.constant 0 : index
    %1 = vector.load %arg1[%c0_1, %c0_2] : memref<128x128xbf16, #tpu.memory_space<vmem>>, vector<128x128xbf16>
    %cst = arith.constant dense<0.000000e+00> : vector<32x128xf32>
    %2 = tpu.matmul %0, %1, %cst {dimension_numbers = #tpu.dot_dimension_numbers<[1], [0], [0], [1], [0, 0, 1, 1], [], []>} : vector<32x128xbf16>, vector<128x128xbf16>, vector<32x128xf32> -> vector<32x128xf32>
    %c0_3 = arith.constant 0 : index
    %c0_4 = arith.constant 0 : index
    %3 = vector.load %arg3[%c0_3, %c0_4] : memref<32x1xf32, #tpu.memory_space<vmem>>, vector<32x1xf32>
    %4 = vector.broadcast %3 : vector<32x1xf32> to vector<32x128xf32>
    %5 = arith.addf %2, %4 : vector<32x128xf32>
    %cst_5 = arith.constant 0.000000e+00 : f32
    %6 = vector.broadcast %cst_5 : f32 to vector<32x128xf32>
    %7 = arith.maximumf %5, %6 : vector<32x128xf32>
    %c0_6 = arith.constant 0 : index
    %c0_7 = arith.constant 0 : index
    %8 = vector.load %arg4[%c0_6, %c0_7] : memref<32x32xbf16, #tpu.memory_space<vmem>>, vector<32x32xbf16>
    %9 = arith.truncf %7 : vector<32x128xf32> to vector<32x128xbf16>
    %cst_8 = arith.constant dense<0.000000e+00> : vector<32x128xf32>
    %10 = tpu.matmul %8, %9, %cst_8 {dimension_numbers = #tpu.dot_dimension_numbers<[1], [0], [0], [1], [0, 0, 1, 1], [], []>} : vector<32x32xbf16>, vector<32x128xbf16>, vector<32x128xf32> -> vector<32x128xf32>
    %c0_9 = arith.constant 0 : index
    %c0_10 = arith.constant 0 : index
    %11 = vector.load %arg5[%c0_9, %c0_10] : memref<32x1xf32, #tpu.memory_space<vmem>>, vector<32x1xf32>
    %12 = vector.broadcast %11 : vector<32x1xf32> to vector<32x128xf32>
    %13 = arith.addf %10, %12 : vector<32x128xf32>
    %cst_11 = arith.constant 0.000000e+00 : f32
    %14 = vector.broadcast %cst_11 : f32 to vector<32x128xf32>
    %15 = arith.maximumf %13, %14 : vector<32x128xf32>
    %c0_12 = arith.constant 0 : index
    %c0_13 = arith.constant 0 : index
    %16 = vector.load %arg6[%c0_12, %c0_13] : memref<1x32xbf16, #tpu.memory_space<vmem>>, vector<1x32xbf16>
    %17 = arith.truncf %15 : vector<32x128xf32> to vector<32x128xbf16>
    %cst_14 = arith.constant dense<0.000000e+00> : vector<1x128xf32>
    %18 = tpu.matmul %16, %17, %cst_14 {dimension_numbers = #tpu.dot_dimension_numbers<[1], [0], [0], [1], [0, 0, 1, 1], [], []>} : vector<1x32xbf16>, vector<32x128xbf16>, vector<1x128xf32> -> vector<1x128xf32>
    %c0_15 = arith.constant 0 : index
    %c0_16 = arith.constant 0 : index
    %19 = vector.load %arg7[%c0_15, %c0_16] : memref<1x1xf32, #tpu.memory_space<vmem>>, vector<1x1xf32>
    %20 = vector.broadcast %19 : vector<1x1xf32> to vector<1x128xf32>
    %21 = arith.addf %18, %20 : vector<1x128xf32>
    %c0_17 = arith.constant 0 : index
    %c0_18 = arith.constant 0 : index
    %22 = vector.load %arg8[%c0_17, %c0_18] : memref<1x128xf32, #tpu.memory_space<vmem>>, vector<1x128xf32>
    tpu.vector_store %arg8[%c0_17, %c0_18], %21 {strides = array<i32>} : memref<1x128xf32, #tpu.memory_space<vmem>>, vector<1x128xf32>,
    return
  }
  func.func @transform_0(%arg0: i32) -> (i32, i32) {
    %c0_i32 = arith.constant 0 : i32
    %c0_i32_0 = arith.constant 0 : i32
    return %c0_i32, %arg0 : i32, i32
  }
  func.func @transform_1(%arg0: i32) -> (i32, i32) {
    %c0_i32 = arith.constant 0 : i32
    %c0_i32_0 = arith.constant 0 : i32
    %c0_i32_1 = arith.constant 0 : i32
    return %c0_i32, %c0_i32_0 : i32, i32
  }
  func.func @transform_2(%arg0: i32) -> (i32, i32) {
    %c0_i32 = arith.constant 0 : i32
    %c0_i32_0 = arith.constant 0 : i32
    %c0_i32_1 = arith.constant 0 : i32
    return %c0_i32, %c0_i32_0 : i32, i32
  }
  func.func @transform_3(%arg0: i32) -> (i32, i32) {
    %c0_i32 = arith.constant 0 : i32
    %c0_i32_0 = arith.constant 0 : i32
    %c0_i32_1 = arith.constant 0 : i32
    return %c0_i32, %c0_i32_0 : i32, i32
  }
  func.func @transform_4(%arg0: i32) -> (i32, i32) {
    %c0_i32 = arith.constant 0 : i32
    %c0_i32_0 = arith.constant 0 : i32
    %c0_i32_1 = arith.constant 0 : i32
    return %c0_i32, %c0_i32_0 : i32, i32
  }
  func.func @transform_5(%arg0: i32) -> (i32, i32) {
    %c0_i32 = arith.constant 0 : i32
    %c0_i32_0 = arith.constant 0 : i32
    %c0_i32_1 = arith.constant 0 : i32
    return %c0_i32, %c0_i32_0 : i32, i32
  }
  func.func @transform_6(%arg0: i32) -> (i32, i32) {
    %c0_i32 = arith.constant 0 : i32
    %c0_i32_0 = arith.constant 0 : i32
    %c0_i32_1 = arith.constant 0 : i32
    return %c0_i32, %c0_i32_0 : i32, i32
  }
  func.func @transform_7(%arg0: i32) -> (i32, i32) {
    %c0_i32 = arith.constant 0 : i32
    %c0_i32_0 = arith.constant 0 : i32
    return %c0_i32, %arg0 : i32, i32
  }
}

module attributes {stable_mosaic.version = 11 : i64} {
  func.func @_critic_kernel(%arg0: i32, %arg1: memref<128x128xbf16, #tpu.memory_space<vmem>>, %arg2: memref<32x128xbf16, #tpu.memory_space<vmem>>, %arg3: memref<32x1xf32, #tpu.memory_space<vmem>>, %arg4: memref<32x32xbf16, #tpu.memory_space<vmem>>, %arg5: memref<32x1xf32, #tpu.memory_space<vmem>>, %arg6: memref<1x32xbf16, #tpu.memory_space<vmem>>, %arg7: memref<1x1xf32, #tpu.memory_space<vmem>>, %arg8: memref<1x128xf32, #tpu.memory_space<vmem>>) attributes {dimension_semantics = [#tpu.dimension_semantics<parallel>], iteration_bounds = array<i64: 1>, scalar_prefetch = 0 : i64, scratch_operands = 0 : i64, tpu.core_type = #tpu.core_type<tc>, window_params = [{transform_indices = @transform_0, window_bounds = array<i64: 128, 128>}, {pipeline_mode = #tpu.pipeline_mode<synchronous>, transform_indices = @transform_1, window_bounds = array<i64: 32, 128>}, {pipeline_mode = #tpu.pipeline_mode<synchronous>, transform_indices = @transform_2, window_bounds = array<i64: 32, 1>}, {pipeline_mode = #tpu.pipeline_mode<synchronous>, transform_indices = @transform_3, window_bounds = array<i64: 32, 32>}, {pipeline_mode = #tpu.pipeline_mode<synchronous>, transform_indices = @transform_4, window_bounds = array<i64: 32, 1>}, {pipeline_mode = #tpu.pipeline_mode<synchronous>, transform_indices = @transform_5, window_bounds = array<i64: 1, 32>}, {pipeline_mode = #tpu.pipeline_mode<synchronous>, transform_indices = @transform_6, window_bounds = array<i64: 1, 1>}, {transform_indices = @transform_7, window_bounds = array<i64: 1, 128>}]} {
    %c0 = arith.constant 0 : index
    %c0_0 = arith.constant 0 : index
    %0 = vector.load %arg2[%c0, %c0_0] : memref<32x128xbf16, #tpu.memory_space<vmem>>, vector<32x128xbf16>
    %c0_1 = arith.constant 0 : index
    %c0_2 = arith.constant 0 : index
    %1 = vector.load %arg1[%c0_1, %c0_2] : memref<128x128xbf16, #tpu.memory_space<vmem>>, vector<128x128xbf16>
    %cst = arith.constant dense<0.000000e+00> : vector<32x128xf32>
    %2 = tpu.matmul %0, %1, %cst {dimension_numbers = #tpu.dot_dimension_numbers<[1], [0], [0], [1], [0, 0, 1, 1], [], []>} : vector<32x128xbf16>, vector<128x128xbf16>, vector<32x128xf32> -> vector<32x128xf32>
    %c0_3 = arith.constant 0 : index
    %c0_4 = arith.constant 0 : index
    %3 = vector.load %arg3[%c0_3, %c0_4] : memref<32x1xf32, #tpu.memory_space<vmem>>, vector<32x1xf32>
    %4 = vector.broadcast %3 : vector<32x1xf32> to vector<32x128xf32>
    %5 = arith.addf %2, %4 : vector<32x128xf32>
    %cst_5 = arith.constant 0.000000e+00 : f32
    %6 = vector.broadcast %cst_5 : f32 to vector<32x128xf32>
    %7 = arith.maximumf %5, %6 : vector<32x128xf32>
    %c0_6 = arith.constant 0 : index
    %c0_7 = arith.constant 0 : index
    %8 = vector.load %arg4[%c0_6, %c0_7] : memref<32x32xbf16, #tpu.memory_space<vmem>>, vector<32x32xbf16>
    %9 = arith.truncf %7 : vector<32x128xf32> to vector<32x128xbf16>
    %cst_8 = arith.constant dense<0.000000e+00> : vector<32x128xf32>
    %10 = tpu.matmul %8, %9, %cst_8 {dimension_numbers = #tpu.dot_dimension_numbers<[1], [0], [0], [1], [0, 0, 1, 1], [], []>} : vector<32x32xbf16>, vector<32x128xbf16>, vector<32x128xf32> -> vector<32x128xf32>
    %c0_9 = arith.constant 0 : index
    %c0_10 = arith.constant 0 : index
    %11 = vector.load %arg5[%c0_9, %c0_10] : memref<32x1xf32, #tpu.memory_space<vmem>>, vector<32x1xf32>
    %12 = vector.broadcast %11 : vector<32x1xf32> to vector<32x128xf32>
    %13 = arith.addf %10, %12 : vector<32x128xf32>
    %cst_11 = arith.constant 0.000000e+00 : f32
    %14 = vector.broadcast %cst_11 : f32 to vector<32x128xf32>
    %15 = arith.maximumf %13, %14 : vector<32x128xf32>
    %c0_12 = arith.constant 0 : index
    %c0_13 = arith.constant 0 : index
    %16 = vector.load %arg6[%c0_12, %c0_13] : memref<1x32xbf16, #tpu.memory_space<vmem>>, vector<1x32xbf16>
    %17 = arith.truncf %15 : vector<32x128xf32> to vector<32x128xbf16>
    %cst_14 = arith.constant dense<0.000000e+00> : vector<1x128xf32>
    %18 = tpu.matmul %16, %17, %cst_14 {dimension_numbers = #tpu.dot_dimension_numbers<[1], [0], [0], [1], [0, 0, 1, 1], [], []>} : vector<1x32xbf16>, vector<32x128xbf16>, vector<1x128xf32> -> vector<1x128xf32>
    %c0_15 = arith.constant 0 : index
    %c0_16 = arith.constant 0 : index
    %19 = vector.load %arg7[%c0_15, %c0_16] : memref<1x1xf32, #tpu.memory_space<vmem>>, vector<1x1xf32>
    %20 = vector.broadcast %19 : vector<1x1xf32> to vector<1x128xf32>
    %21 = arith.addf %18, %20 : vector<1x128xf32>
    %c0_17 = arith.constant 0 : index
    %c0_18 = arith.constant 0 : index
    %22 = vector.load %arg8[%c0_17, %c0_18] : memref<1x128xf32, #tpu.memory_space<vmem>>, vector<1x128xf32>
    tpu.vector_store %arg8[%c0_17, %c0_18], %21 {strides = array<i32>} : memref<1x128xf32, #tpu.memory_space<vmem>>, vector<1x128xf32>,
    return
  }
  func.func @transform_0(%arg0: i32) -> (i32, i32) {
    %c0_i32 = arith.constant 0 : i32
    %c0_i32_0 = arith.constant 0 : i32
    return %c0_i32, %arg0 : i32, i32
  }
  func.func @transform_1(%arg0: i32) -> (i32, i32) {
    %c0_i32 = arith.constant 0 : i32
    %c0_i32_0 = arith.constant 0 : i32
    %c0_i32_1 = arith.constant 0 : i32
    return %c0_i32, %c0_i32_0 : i32, i32
  }
  func.func @transform_2(%arg0: i32) -> (i32, i32) {
    %c0_i32 = arith.constant 0 : i32
    %c0_i32_0 = arith.constant 0 : i32
    %c0_i32_1 = arith.constant 0 : i32
    return %c0_i32, %c0_i32_0 : i32, i32
  }
  func.func @transform_3(%arg0: i32) -> (i32, i32) {
    %c0_i32 = arith.constant 0 : i32
    %c0_i32_0 = arith.constant 0 : i32
    %c0_i32_1 = arith.constant 0 : i32
    return %c0_i32, %c0_i32_0 : i32, i32
  }
  func.func @transform_4(%arg0: i32) -> (i32, i32) {
    %c0_i32 = arith.constant 0 : i32
    %c0_i32_0 = arith.constant 0 : i32
    %c0_i32_1 = arith.constant 0 : i32
    return %c0_i32, %c0_i32_0 : i32, i32
  }
  func.func @transform_5(%arg0: i32) -> (i32, i32) {
    %c0_i32 = arith.constant 0 : i32
    %c0_i32_0 = arith.constant 0 : i32
    %c0_i32_1 = arith.constant 0 : i32
    return %c0_i32, %c0_i32_0 : i32, i32
  }
  func.func @transform_6(%arg0: i32) -> (i32, i32) {
    %c0_i32 = arith.constant 0 : i32
    %c0_i32_0 = arith.constant 0 : i32
    %c0_i32_1 = arith.constant 0 : i32
    return %c0_i32, %c0_i32_0 : i32, i32
  }
  func.func @transform_7(%arg0: i32) -> (i32, i32) {
    %c0_i32 = arith.constant 0 : i32
    %c0_i32_0 = arith.constant 0 : i32
    return %c0_i32, %arg0 : i32, i32
  }
}

</mosaic_0001>

<llo_original>
// kernel: tpu_custom_call.1
$region0: #{tpu_custom_call.1}
  #allocation0 [shape = 'u32[]', space=smem, size = 0x4, offset = 0x4, fixed_abs, tag = 'smem constant byte address 0x4 - core index']
  #allocation1 [shape = 'u32[144,128]{1,0:T(1,128)}', space=vmem, size = 0x12000, scoped, tag = 'internal scratch']
  #allocation2 [shape = 'f32[1,1]{1,0:T(1,128)S(1)}', space=vmem, size = 0x200, scoped, tag = 'scoped memory for tpu_custom_call.1']
  %s0 = inlined_call_operand.vmem [shape: bf16[128,128], index: 0, kind: input, shape index: {}]
  %s1 = inlined_call_operand.hbm [shape: bf16[32,128], index: 1, kind: input, shape index: {}]
  %s2 = inlined_call_operand.vmem [shape: f32[32,1], index: 2, kind: input, shape index: {}]
  %s3 = inlined_call_operand.vmem [shape: bf16[32,32], index: 3, kind: input, shape index: {}]
  %s4 = inlined_call_operand.vmem [shape: f32[32,1], index: 4, kind: input, shape index: {}]
  %s5 = inlined_call_operand.vmem [shape: bf16[1,32], index: 5, kind: input, shape index: {}]
  %s6 = inlined_call_operand.<no memory space> [shape: f32[1,1], index: 6, kind: input, shape index: {}]
  %s7 = inlined_call_operand.hbm [shape: f32[1,128], index: 7, kind: output, shape index: {}]
  %s8 = sld [smem:[#allocation0]]
  $region42: #{tpu_custom_call.1} parent=0
    _
  %s10 = ssub.s32 1, %s8
  %s11 = scalar_select 0, %s10, %s8
  %v12 = vstv %s6
  %13 = vst [vmem:[#allocation2] sm:$0x1] %v12
  $region1: #{tpu_custom_call.1} parent=0
    #allocation3 [shape = 'u8[8192]{0}', space=vmem, size = 0x2000, scoped, tag = 'input window, operand 1, single buffered']
    #allocation4 [shape = 's32[1]{0}', space=sflag, size = 0x4, scoped, tag = 'scoped memory for tpu_custom_call.1']
    #allocation5 [shape = 's32[1]{0}', space=sflag, size = 0x4, scoped, tag = 'scoped memory for tpu_custom_call.1']
    #allocation6 [shape = 'u8[512]{0}', space=vmem, size = 0x400, scoped, tag = 'output window, operand 0, single buffered']
    %14 = vsyncpa [#allocation4], 0
    %15 = vsyncpa [#allocation5], 0
    // Predicated region
    $region2: #{tpu_custom_call.1} parent=1 // pred_check
      _
    $region3: #{tpu_custom_call.1} parent=1 // pred_check_branch
      %17 = sbr.rel (0) target = $region5
    $region4: #{tpu_custom_call.1} parent=1 // pred_region
      _
    $region5: #{tpu_custom_call.1} parent=1 // pred_fallthru
      _
    // Predicated region
    $region6: #{tpu_custom_call.1} parent=1 // pred_check
      _
    $region7: #{tpu_custom_call.1} parent=1 // pred_check_branch
      %19 = sbr.rel (0) target = $region9
    $region8: #{tpu_custom_call.1} parent=1 // pred_region
      %s21 = ssub.s32 256, 256
      %22 = vsyncadd [#allocation4], %s21
      %s23 = sshll.u32 [#allocation3], 4
      %s24 = int_to_ptr.vmem [resolvable:$true] %s23
      %29 = dma.hbm_to_vmem [thread:$0]  %s1, 256, %s24, [#allocation4], 64, 64, 4
    $region9: #{tpu_custom_call.1} parent=1 // pred_fallthru
      _
    // Predicated region
    $region10: #{tpu_custom_call.1} parent=1 // pred_check
      _
    $region11: #{tpu_custom_call.1} parent=1 // pred_check_branch
      %31 = sbr.rel (0) target = $region13
    $region12: #{tpu_custom_call.1} parent=1 // pred_region
      _
    $region13: #{tpu_custom_call.1} parent=1 // pred_fallthru
      _
    // Predicated region
    $region14: #{tpu_custom_call.1} parent=1 // pred_check
      _
    $region15: #{tpu_custom_call.1} parent=1 // pred_check_branch
      %33 = sbr.rel (0) target = $region17
    $region16: #{tpu_custom_call.1} parent=1 // pred_region
      _
    $region17: #{tpu_custom_call.1} parent=1 // pred_fallthru
      _
    // Predicated region
    $region18: #{tpu_custom_call.1} parent=1 // pred_check
      _
    $region19: #{tpu_custom_call.1} parent=1 // pred_check_branch
      %35 = sbr.rel (0) target = $region21
    $region20: #{tpu_custom_call.1} parent=1 // pred_region
      _
    $region21: #{tpu_custom_call.1} parent=1 // pred_fallthru
      _
    // Predicated region
    $region22: #{tpu_custom_call.1} parent=1 // pred_check
      _
    $region23: #{tpu_custom_call.1} parent=1 // pred_check_branch
      %37 = sbr.rel (0) target = $region25
    $region24: #{tpu_custom_call.1} parent=1 // pred_region
      _
    $region25: #{tpu_custom_call.1} parent=1 // pred_fallthru
      _
    // Predicated region
    $region26: #{tpu_custom_call.1} parent=1 // pred_check
      _
    $region27: #{tpu_custom_call.1} parent=1 // pred_check_branch
      %39 = sbr.rel (0) target = $region29
    $region28: #{tpu_custom_call.1} parent=1 // pred_region
      _
    $region29: #{tpu_custom_call.1} parent=1 // pred_fallthru
      _
    // Predicated region
    $region30: #{tpu_custom_call.1} parent=1 // pred_check
      _
    $region31: #{tpu_custom_call.1} parent=1 // pred_check_branch
      %41 = sbr.rel (0) target = $region33
    $region32: #{tpu_custom_call.1} parent=1 // pred_region
      %42 = dma.done [#allocation4], 256
    $region33: #{tpu_custom_call.1} parent=1 // pred_fallthru
      _
    %v44 = vld [vmem:[#allocation3] sm:$0xf]
    %v45 = vld [vmem:[#allocation3 + $0x4] sm:$0xf]
    %v46 = vld [vmem:[#allocation3 + $0x8] sm:$0xf]
    %v47 = vld [vmem:[#allocation3 + $0xc] sm:$0xf]
    %v48 = vld [vmem:[%s0] sm:$0xf]
    %v49 = vld [vmem:[%s0 + $0x4] sm:$0xf]
    %v50 = vld [vmem:[%s0 + $0x8] sm:$0xf]
    %v51 = vld [vmem:[%s0 + $0xc] sm:$0xf]
    %v52 = vld [vmem:[%s0 + $0x10] sm:$0xf]
    %v53 = vld [vmem:[%s0 + $0x14] sm:$0xf]
    %v54 = vld [vmem:[%s0 + $0x18] sm:$0xf]
    %v55 = vld [vmem:[%s0 + $0x1c] sm:$0xf]
    %v56 = vld [vmem:[%s0 + $0x20] sm:$0xf]
    %v57 = vld [vmem:[%s0 + $0x24] sm:$0xf]
    %v58 = vld [vmem:[%s0 + $0x28] sm:$0xf]
    %v59 = vld [vmem:[%s0 + $0x2c] sm:$0xf]
    %v60 = vld [vmem:[%s0 + $0x30] sm:$0xf]
    %v61 = vld [vmem:[%s0 + $0x34] sm:$0xf]
    %v62 = vld [vmem:[%s0 + $0x38] sm:$0xf]
    %v63 = vld [vmem:[%s0 + $0x3c] sm:$0xf]
    %v64 = vld [vmem:[%s2] sm:$0xff]
    %v65 = vld [vmem:[%s2 + $0x8] sm:$0xff]
    %v66 = vld [vmem:[%s2 + $0x10] sm:$0xff]
    %v67 = vld [vmem:[%s2 + $0x18] sm:$0xff]
    %69 = vset.pattern.permute.xlu0 0
    %70 = vperm.xlu0 %69, %v64
    %v71 = vpop.permute.xlu0 %70
    %74 = vset.pattern.permute.xlu0 0
    %75 = vperm.xlu0 %74, %v65
    %v76 = vpop.permute.xlu0 %75
    %79 = vset.pattern.permute.xlu0 0
    %80 = vperm.xlu0 %79, %v66
    %v81 = vpop.permute.xlu0 %80
    %84 = vset.pattern.permute.xlu0 0
    %85 = vperm.xlu0 %84, %v67
    %v86 = vpop.permute.xlu0 %85
    %v92 = vunpack.c.l.b16 %v44
    %v93 = vunpack.c.l.b16 %v45
    %v94 = vunpack.c.l.b16 %v46
    %v95 = vunpack.c.l.b16 %v47
    %v96 = vpack.c.b16 %v93, %v92
    %v97 = vpack.c.b16 %v95, %v94
    %v116 = vunpack.c.l.b16 %v48
    %v117 = vunpack.c.l.b16 %v49
    %v118 = vunpack.c.l.b16 %v50
    %v119 = vunpack.c.l.b16 %v51
    %v120 = vunpack.c.l.b16 %v52
    %v121 = vunpack.c.l.b16 %v53
    %v122 = vunpack.c.l.b16 %v54
    %v123 = vunpack.c.l.b16 %v55
    %v124 = vunpack.c.l.b16 %v56
    %v125 = vunpack.c.l.b16 %v57
    %v126 = vunpack.c.l.b16 %v58
    %v127 = vunpack.c.l.b16 %v59
    %v128 = vunpack.c.l.b16 %v60
    %v129 = vunpack.c.l.b16 %v61
    %v130 = vunpack.c.l.b16 %v62
    %v131 = vunpack.c.l.b16 %v63
    %v132 = vpack.c.b16 %v117, %v116
    %v133 = vpack.c.b16 %v119, %v118
    %v134 = vpack.c.b16 %v121, %v120
    %v135 = vpack.c.b16 %v123, %v122
    %v136 = vpack.c.b16 %v125, %v124
    %v137 = vpack.c.b16 %v127, %v126
    %v138 = vpack.c.b16 %v129, %v128
    %v139 = vpack.c.b16 %v131, %v130
    %148 = vmatprep.subr.bf16.mxu0 0
    %149 = vmatpush1.bf16.msra.mxu0 %v132
    %150 = vmatprep.subr.bf16.mxu0 0
    %151 = vmatpush1.bf16.msra.mxu0 %v133
    %152 = vmatprep.subr.bf16.mxu0 0
    %153 = vmatpush1.bf16.msra.mxu0 %v134
    %154 = vmatprep.subr.bf16.mxu0 0
    %155 = vmatpush1.bf16.msra.mxu0 %v135
    %156 = vmatprep.subr.bf16.mxu0 0
    %157 = vmatpush1.bf16.msra.mxu0 %v136
    %158 = vmatprep.subr.bf16.mxu0 0
    %159 = vmatpush1.bf16.msra.mxu0 %v137
    %160 = vmatprep.subr.bf16.mxu0 0
    %161 = vmatpush1.bf16.msra.mxu0 %v138
    %162 = vmatprep.subr.bf16.mxu0 0
    %163 = vmatpush1.bf16.msra.mxu0 %v139
    %164 = vmatprep.subr.bf16.mxu0 0
    %165 = vmatpush1.bf16.msra.mxu0 0
    %166 = vmatprep.subr.bf16.mxu0 0
    %167 = vmatpush1.bf16.msra.mxu0 0
    %168 = vmatprep.subr.bf16.mxu0 0
    %169 = vmatpush1.bf16.msra.mxu0 0
    %170 = vmatprep.subr.bf16.mxu0 0
    %171 = vmatpush1.bf16.msra.mxu0 0
    %172 = vmatprep.subr.bf16.mxu0 0
    %173 = vmatpush1.bf16.msra.mxu0 0
    %174 = vmatprep.subr.bf16.mxu0 0
    %175 = vmatpush1.bf16.msra.mxu0 0
    %176 = vmatprep.subr.bf16.mxu0 0
    %177 = vmatpush1.bf16.msra.mxu0 0
    %178 = vmatprep.subr.bf16.mxu0 0
    %179 = vmatpush1.bf16.msra.mxu0 0
    %180 = vmatprep.mubr.bf16.mxu0 0
    %181 = vmatmul.mubr.bf16.gmra.mrb[0].mxu0 %v96
    %v182 = vpop.f32.mrb[0].mxu0
    %v183 = vadd.f32 %v71, %v182
    %v184 = vpop.f32.mrb[0].mxu0
    %v185 = vpop.f32.mrb[0].mxu0
    %v186 = vadd.f32 %v76, %v185
    %v187 = vpop.f32.mrb[0].mxu0
    %188 = vmatprep.mubr.bf16.mxu0 0
    %189 = vmatmul.mubr.bf16.gmra.mrb[0].mxu0 %v97
    %v190 = vpop.f32.mrb[0].mxu0
    %v191 = vadd.f32 %v81, %v190
    %v192 = vpop.f32.mrb[0].mxu0
    %v193 = vpop.f32.mrb[0].mxu0
    %v194 = vadd.f32 %v86, %v193
    %v195 = vpop.f32.mrb[0].mxu0
    %196 = vdwg.mxu0
    %v197 = vmax.f32 %v183, 0.0
    %v198 = vmax.f32 %v186, 0.0
    %v199 = vmax.f32 %v191, 0.0
    %v200 = vmax.f32 %v194, 0.0
    %v201 = vld [vmem:[%s3] sm:$0xf]
    %v202 = vld [vmem:[%s3 + $0x4] sm:$0xf]
    %v203 = vld [vmem:[%s3 + $0x8] sm:$0xf]
    %v204 = vld [vmem:[%s3 + $0xc] sm:$0xf]
    %v205 = vpack.c.bf16 %v198, %v197
    %v206 = vpack.c.bf16 %v200, %v199
    %v207 = vld [vmem:[%s4] sm:$0xff]
    %v208 = vld [vmem:[%s4 + $0x8] sm:$0xff]
    %v209 = vld [vmem:[%s4 + $0x10] sm:$0xff]
    %v210 = vld [vmem:[%s4 + $0x18] sm:$0xff]
    %212 = vset.pattern.permute.xlu0 0
    %213 = vperm.xlu0 %212, %v207
    %v214 = vpop.permute.xlu0 %213
    %217 = vset.pattern.permute.xlu0 0
    %218 = vperm.xlu0 %217, %v208
    %v219 = vpop.permute.xlu0 %218
    %222 = vset.pattern.permute.xlu0 0
    %223 = vperm.xlu0 %222, %v209
    %v224 = vpop.permute.xlu0 %223
    %227 = vset.pattern.permute.xlu0 0
    %228 = vperm.xlu0 %227, %v210
    %v229 = vpop.permute.xlu0 %228
    %v235 = vunpack.c.l.b16 %v201
    %v236 = vunpack.c.l.b16 %v202
    %v237 = vunpack.c.l.b16 %v203
    %v238 = vunpack.c.l.b16 %v204
    %v239 = vpack.c.b16 %v236, %v235
    %v240 = vpack.c.b16 %v238, %v237
    %vm241 = vcmask 261120
    %v243 = vsel %vm241, %v239, 0
    %v246 = vsel %vm241, %v240, 0
    %248 = vmatprep.subr.bf16.mxu0 0
    %249 = vmatpush1.bf16.msra.mxu0 %v205
    %250 = vmatprep.subr.bf16.mxu0 0
    %251 = vmatpush1.bf16.msra.mxu0 %v206
    %252 = vmatprep.subr.bf16.mxu0 0
    %253 = vmatpush1.bf16.msra.mxu0 0
    %254 = vmatprep.subr.bf16.mxu0 0
    %255 = vmatpush1.bf16.msra.mxu0 0
    %256 = vmatprep.subr.bf16.mxu0 0
    %257 = vmatpush1.bf16.msra.mxu0 0
    %258 = vmatprep.subr.bf16.mxu0 0
    %259 = vmatpush1.bf16.msra.mxu0 0
    %260 = vmatprep.subr.bf16.mxu0 0
    %261 = vmatpush1.bf16.msra.mxu0 0
    %262 = vmatprep.subr.bf16.mxu0 0
    %263 = vmatpush1.bf16.msra.mxu0 0
    %264 = vmatprep.subr.bf16.mxu0 0
    %265 = vmatpush1.bf16.msra.mxu0 0
    %266 = vmatprep.subr.bf16.mxu0 0
    %267 = vmatpush1.bf16.msra.mxu0 0
    %268 = vmatprep.subr.bf16.mxu0 0
    %269 = vmatpush1.bf16.msra.mxu0 0
    %270 = vmatprep.subr.bf16.mxu0 0
    %271 = vmatpush1.bf16.msra.mxu0 0
    %272 = vmatprep.subr.bf16.mxu0 0
    %273 = vmatpush1.bf16.msra.mxu0 0
    %274 = vmatprep.subr.bf16.mxu0 0
    %275 = vmatpush1.bf16.msra.mxu0 0
    %276 = vmatprep.subr.bf16.mxu0 0
    %277 = vmatpush1.bf16.msra.mxu0 0
    %278 = vmatprep.subr.bf16.mxu0 0
    %279 = vmatpush1.bf16.msra.mxu0 0
    %280 = vmatprep.mubr.bf16.mxu0 0
    %281 = vmatmul.mubr.bf16.gmra.mrb[0].mxu0 %v243
    %v282 = vpop.f32.mrb[0].mxu0
    %v283 = vadd.f32 %v214, %v282
    %v284 = vpop.f32.mrb[0].mxu0
    %v285 = vpop.f32.mrb[0].mxu0
    %v286 = vadd.f32 %v219, %v285
    %v287 = vpop.f32.mrb[0].mxu0
    %288 = vmatprep.mubr.bf16.mxu0 0
    %289 = vmatmul.mubr.bf16.gmra.mrb[0].mxu0 %v246
    %v290 = vpop.f32.mrb[0].mxu0
    %v291 = vadd.f32 %v224, %v290
    %v292 = vpop.f32.mrb[0].mxu0
    %v293 = vpop.f32.mrb[0].mxu0
    %v294 = vadd.f32 %v229, %v293
    %v295 = vpop.f32.mrb[0].mxu0
    %296 = vdwg.mxu0
    %v297 = vmax.f32 %v283, 0.0
    %v298 = vmax.f32 %v286, 0.0
    %v299 = vmax.f32 %v291, 0.0
    %v300 = vmax.f32 %v294, 0.0
    %v301 = vld [vmem:[%s5] sm:$0x1]
    %v302 = vpack.c.bf16 %v298, %v297
    %v303 = vpack.c.bf16 %v300, %v299
    %v304 = vld [vmem:[#allocation2] sm:$0x1]
    %306 = vset.pattern.permute.xlu0 0
    %307 = vperm.xlu0 %306, %v304
    %v308 = vpop.permute.xlu0 %307
    %v310 = vlaneseq
    %v311 = vshrl.u32 %v310, 7
    %v312 = vsub.s32 0, %v311
    %v313 = vrot.slane %v308, %v312
    %v315 = vsel %vm241, %v301, 0
    %317 = vmatprep.subr.bf16.mxu0 0
    %318 = vmatpush1.bf16.msra.mxu0 %v302
    %319 = vmatprep.subr.bf16.mxu0 0
    %320 = vmatpush1.bf16.msra.mxu0 %v303
    %321 = vmatprep.subr.bf16.mxu0 0
    %322 = vmatpush1.bf16.msra.mxu0 0
    %323 = vmatprep.subr.bf16.mxu0 0
    %324 = vmatpush1.bf16.msra.mxu0 0
    %325 = vmatprep.subr.bf16.mxu0 0
    %326 = vmatpush1.bf16.msra.mxu0 0
    %327 = vmatprep.subr.bf16.mxu0 0
    %328 = vmatpush1.bf16.msra.mxu0 0
    %329 = vmatprep.subr.bf16.mxu0 0
    %330 = vmatpush1.bf16.msra.mxu0 0
    %331 = vmatprep.subr.bf16.mxu0 0
    %332 = vmatpush1.bf16.msra.mxu0 0
    %333 = vmatprep.subr.bf16.mxu0 0
    %334 = vmatpush1.bf16.msra.mxu0 0
    %335 = vmatprep.subr.bf16.mxu0 0
    %336 = vmatpush1.bf16.msra.mxu0 0
    %337 = vmatprep.subr.bf16.mxu0 0
    %338 = vmatpush1.bf16.msra.mxu0 0
    %339 = vmatprep.subr.bf16.mxu0 0
    %340 = vmatpush1.bf16.msra.mxu0 0
    %341 = vmatprep.subr.bf16.mxu0 0
    %342 = vmatpush1.bf16.msra.mxu0 0
    %343 = vmatprep.subr.bf16.mxu0 0
    %344 = vmatpush1.bf16.msra.mxu0 0
    %345 = vmatprep.subr.bf16.mxu0 0
    %346 = vmatpush1.bf16.msra.mxu0 0
    %347 = vmatprep.subr.bf16.mxu0 0
    %348 = vmatpush1.bf16.msra.mxu0 0
    %349 = vmatprep.mubr.bf16.mxu0 0
    %350 = vmatmul.mubr.bf16.gmra.mrb[0].mxu0 %v315
    %v351 = vpop.f32.mrb[0].mxu0
    %v352 = vadd.f32 %v313, %v351
    %v353 = vpop.f32.mrb[0].mxu0
    %v354 = vpop.f32.mrb[0].mxu0
    %v355 = vpop.f32.mrb[0].mxu0
    %356 = vdwg.mxu0
    %357 = vst [vmem:[#allocation6] sm:$0x1] %v352
    // Predicated region
    $region34: #{tpu_custom_call.1} parent=1 // pred_check
      _
    $region35: #{tpu_custom_call.1} parent=1 // pred_check_branch
      %359 = sbr.rel (0) target = $region37
    $region36: #{tpu_custom_call.1} parent=1 // pred_region
      %s361 = ssub.s32 16, 16
      %362 = vsyncadd [#allocation5], %s361
      %s364 = sshll.u32 [#allocation6], 4
      %s365 = int_to_ptr.vmem [resolvable:$true] %s364
      %367 = dma.vmem_to_hbm [thread:$0]  %s365, 16, %s7, [#allocation5]
    $region37: #{tpu_custom_call.1} parent=1 // pred_fallthru
      _
    // Predicated region
    $region38: #{tpu_custom_call.1} parent=1 // pred_check
      _
    $region39: #{tpu_custom_call.1} parent=1 // pred_check_branch
      %369 = sbr.rel (0) target = $region41
    $region40: #{tpu_custom_call.1} parent=1 // pred_region
      %370 = dma.done [#allocation5], 16
    $region41: #{tpu_custom_call.1} parent=1 // pred_fallthru
      _
    %371 = vsyncpa [#allocation4], 1
    %372 = vsyncpa [#allocation5], 1

// kernel: tpu_custom_call.1
$region0: #{tpu_custom_call.1}
  #allocation0 [shape = 'u32[]', space=smem, size = 0x4, offset = 0x4, fixed_abs, tag = 'smem constant byte address 0x4 - core index']
  #allocation1 [shape = 'u32[144,128]{1,0:T(1,128)}', space=vmem, size = 0x12000, scoped, tag = 'internal scratch']
  #allocation2 [shape = 'f32[1,1]{1,0:T(1,128)S(1)}', space=vmem, size = 0x200, scoped, tag = 'scoped memory for tpu_custom_call.1']
  %s0 = inlined_call_operand.vmem [shape: bf16[128,128], index: 0, kind: input, shape index: {}]
  %s1 = inlined_call_operand.hbm [shape: bf16[32,128], index: 1, kind: input, shape index: {}]
  %s2 = inlined_call_operand.vmem [shape: f32[32,1], index: 2, kind: input, shape index: {}]
  %s3 = inlined_call_operand.vmem [shape: bf16[32,32], index: 3, kind: input, shape index: {}]
  %s4 = inlined_call_operand.vmem [shape: f32[32,1], index: 4, kind: input, shape index: {}]
  %s5 = inlined_call_operand.vmem [shape: bf16[1,32], index: 5, kind: input, shape index: {}]
  %s6 = inlined_call_operand.<no memory space> [shape: f32[1,1], index: 6, kind: input, shape index: {}]
  %s7 = inlined_call_operand.hbm [shape: f32[1,128], index: 7, kind: output, shape index: {}]
  %s8 = sld [smem:[#allocation0]]
  $region42: #{tpu_custom_call.1} parent=0
    _
  %s10 = ssub.s32 1, %s8
  %s11 = scalar_select 0, %s10, %s8
  %v12 = vstv %s6
  %13 = vst [vmem:[#allocation2] sm:$0x1] %v12
  $region1: #{tpu_custom_call.1} parent=0
    #allocation3 [shape = 'u8[8192]{0}', space=vmem, size = 0x2000, scoped, tag = 'input window, operand 1, single buffered']
    #allocation4 [shape = 's32[1]{0}', space=sflag, size = 0x4, scoped, tag = 'scoped memory for tpu_custom_call.1']
    #allocation5 [shape = 's32[1]{0}', space=sflag, size = 0x4, scoped, tag = 'scoped memory for tpu_custom_call.1']
    #allocation6 [shape = 'u8[512]{0}', space=vmem, size = 0x400, scoped, tag = 'output window, operand 0, single buffered']
    %14 = vsyncpa [#allocation4], 0
    %15 = vsyncpa [#allocation5], 0
    // Predicated region
    $region2: #{tpu_custom_call.1} parent=1 // pred_check
      _
    $region3: #{tpu_custom_call.1} parent=1 // pred_check_branch
      %17 = sbr.rel (0) target = $region5
    $region4: #{tpu_custom_call.1} parent=1 // pred_region
      _
    $region5: #{tpu_custom_call.1} parent=1 // pred_fallthru
      _
    // Predicated region
    $region6: #{tpu_custom_call.1} parent=1 // pred_check
      _
    $region7: #{tpu_custom_call.1} parent=1 // pred_check_branch
      %19 = sbr.rel (0) target = $region9
    $region8: #{tpu_custom_call.1} parent=1 // pred_region
      %s21 = ssub.s32 256, 256
      %22 = vsyncadd [#allocation4], %s21
      %s23 = sshll.u32 [#allocation3], 4
      %s24 = int_to_ptr.vmem [resolvable:$true] %s23
      %29 = dma.hbm_to_vmem [thread:$0]  %s1, 256, %s24, [#allocation4], 64, 64, 4
    $region9: #{tpu_custom_call.1} parent=1 // pred_fallthru
      _
    // Predicated region
    $region10: #{tpu_custom_call.1} parent=1 // pred_check
      _
    $region11: #{tpu_custom_call.1} parent=1 // pred_check_branch
      %31 = sbr.rel (0) target = $region13
    $region12: #{tpu_custom_call.1} parent=1 // pred_region
      _
    $region13: #{tpu_custom_call.1} parent=1 // pred_fallthru
      _
    // Predicated region
    $region14: #{tpu_custom_call.1} parent=1 // pred_check
      _
    $region15: #{tpu_custom_call.1} parent=1 // pred_check_branch
      %33 = sbr.rel (0) target = $region17
    $region16: #{tpu_custom_call.1} parent=1 // pred_region
      _
    $region17: #{tpu_custom_call.1} parent=1 // pred_fallthru
      _
    // Predicated region
    $region18: #{tpu_custom_call.1} parent=1 // pred_check
      _
    $region19: #{tpu_custom_call.1} parent=1 // pred_check_branch
      %35 = sbr.rel (0) target = $region21
    $region20: #{tpu_custom_call.1} parent=1 // pred_region
      _
    $region21: #{tpu_custom_call.1} parent=1 // pred_fallthru
      _
    // Predicated region
    $region22: #{tpu_custom_call.1} parent=1 // pred_check
      _
    $region23: #{tpu_custom_call.1} parent=1 // pred_check_branch
      %37 = sbr.rel (0) target = $region25
    $region24: #{tpu_custom_call.1} parent=1 // pred_region
      _
    $region25: #{tpu_custom_call.1} parent=1 // pred_fallthru
      _
    // Predicated region
    $region26: #{tpu_custom_call.1} parent=1 // pred_check
      _
    $region27: #{tpu_custom_call.1} parent=1 // pred_check_branch
      %39 = sbr.rel (0) target = $region29
    $region28: #{tpu_custom_call.1} parent=1 // pred_region
      _
    $region29: #{tpu_custom_call.1} parent=1 // pred_fallthru
      _
    // Predicated region
    $region30: #{tpu_custom_call.1} parent=1 // pred_check
      _
    $region31: #{tpu_custom_call.1} parent=1 // pred_check_branch
      %41 = sbr.rel (0) target = $region33
    $region32: #{tpu_custom_call.1} parent=1 // pred_region
      %42 = dma.done [#allocation4], 256
    $region33: #{tpu_custom_call.1} parent=1 // pred_fallthru
      _
    %v44 = vld [vmem:[#allocation3] sm:$0xf]
    %v45 = vld [vmem:[#allocation3 + $0x4] sm:$0xf]
    %v46 = vld [vmem:[#allocation3 + $0x8] sm:$0xf]
    %v47 = vld [vmem:[#allocation3 + $0xc] sm:$0xf]
    %v48 = vld [vmem:[%s0] sm:$0xf]
    %v49 = vld [vmem:[%s0 + $0x4] sm:$0xf]
    %v50 = vld [vmem:[%s0 + $0x8] sm:$0xf]
    %v51 = vld [vmem:[%s0 + $0xc] sm:$0xf]
    %v52 = vld [vmem:[%s0 + $0x10] sm:$0xf]
    %v53 = vld [vmem:[%s0 + $0x14] sm:$0xf]
    %v54 = vld [vmem:[%s0 + $0x18] sm:$0xf]
    %v55 = vld [vmem:[%s0 + $0x1c] sm:$0xf]
    %v56 = vld [vmem:[%s0 + $0x20] sm:$0xf]
    %v57 = vld [vmem:[%s0 + $0x24] sm:$0xf]
    %v58 = vld [vmem:[%s0 + $0x28] sm:$0xf]
    %v59 = vld [vmem:[%s0 + $0x2c] sm:$0xf]
    %v60 = vld [vmem:[%s0 + $0x30] sm:$0xf]
    %v61 = vld [vmem:[%s0 + $0x34] sm:$0xf]
    %v62 = vld [vmem:[%s0 + $0x38] sm:$0xf]
    %v63 = vld [vmem:[%s0 + $0x3c] sm:$0xf]
    %v64 = vld [vmem:[%s2] sm:$0xff]
    %v65 = vld [vmem:[%s2 + $0x8] sm:$0xff]
    %v66 = vld [vmem:[%s2 + $0x10] sm:$0xff]
    %v67 = vld [vmem:[%s2 + $0x18] sm:$0xff]
    %69 = vset.pattern.permute.xlu0 0
    %70 = vperm.xlu0 %69, %v64
    %v71 = vpop.permute.xlu0 %70
    %74 = vset.pattern.permute.xlu0 0
    %75 = vperm.xlu0 %74, %v65
    %v76 = vpop.permute.xlu0 %75
    %79 = vset.pattern.permute.xlu0 0
    %80 = vperm.xlu0 %79, %v66
    %v81 = vpop.permute.xlu0 %80
    %84 = vset.pattern.permute.xlu0 0
    %85 = vperm.xlu0 %84, %v67
    %v86 = vpop.permute.xlu0 %85
    %v92 = vunpack.c.l.b16 %v44
    %v93 = vunpack.c.l.b16 %v45
    %v94 = vunpack.c.l.b16 %v46
    %v95 = vunpack.c.l.b16 %v47
    %v96 = vpack.c.b16 %v93, %v92
    %v97 = vpack.c.b16 %v95, %v94
    %v116 = vunpack.c.l.b16 %v48
    %v117 = vunpack.c.l.b16 %v49
    %v118 = vunpack.c.l.b16 %v50
    %v119 = vunpack.c.l.b16 %v51
    %v120 = vunpack.c.l.b16 %v52
    %v121 = vunpack.c.l.b16 %v53
    %v122 = vunpack.c.l.b16 %v54
    %v123 = vunpack.c.l.b16 %v55
    %v124 = vunpack.c.l.b16 %v56
    %v125 = vunpack.c.l.b16 %v57
    %v126 = vunpack.c.l.b16 %v58
    %v127 = vunpack.c.l.b16 %v59
    %v128 = vunpack.c.l.b16 %v60
    %v129 = vunpack.c.l.b16 %v61
    %v130 = vunpack.c.l.b16 %v62
    %v131 = vunpack.c.l.b16 %v63
    %v132 = vpack.c.b16 %v117, %v116
    %v133 = vpack.c.b16 %v119, %v118
    %v134 = vpack.c.b16 %v121, %v120
    %v135 = vpack.c.b16 %v123, %v122
    %v136 = vpack.c.b16 %v125, %v124
    %v137 = vpack.c.b16 %v127, %v126
    %v138 = vpack.c.b16 %v129, %v128
    %v139 = vpack.c.b16 %v131, %v130
    %148 = vmatprep.subr.bf16.mxu0 0
    %149 = vmatpush1.bf16.msra.mxu0 %v132
    %150 = vmatprep.subr.bf16.mxu0 0
    %151 = vmatpush1.bf16.msra.mxu0 %v133
    %152 = vmatprep.subr.bf16.mxu0 0
    %153 = vmatpush1.bf16.msra.mxu0 %v134
    %154 = vmatprep.subr.bf16.mxu0 0
    %155 = vmatpush1.bf16.msra.mxu0 %v135
    %156 = vmatprep.subr.bf16.mxu0 0
    %157 = vmatpush1.bf16.msra.mxu0 %v136
    %158 = vmatprep.subr.bf16.mxu0 0
    %159 = vmatpush1.bf16.msra.mxu0 %v137
    %160 = vmatprep.subr.bf16.mxu0 0
    %161 = vmatpush1.bf16.msra.mxu0 %v138
    %162 = vmatprep.subr.bf16.mxu0 0
    %163 = vmatpush1.bf16.msra.mxu0 %v139
    %164 = vmatprep.subr.bf16.mxu0 0
    %165 = vmatpush1.bf16.msra.mxu0 0
    %166 = vmatprep.subr.bf16.mxu0 0
    %167 = vmatpush1.bf16.msra.mxu0 0
    %168 = vmatprep.subr.bf16.mxu0 0
    %169 = vmatpush1.bf16.msra.mxu0 0
    %170 = vmatprep.subr.bf16.mxu0 0
    %171 = vmatpush1.bf16.msra.mxu0 0
    %172 = vmatprep.subr.bf16.mxu0 0
    %173 = vmatpush1.bf16.msra.mxu0 0
    %174 = vmatprep.subr.bf16.mxu0 0
    %175 = vmatpush1.bf16.msra.mxu0 0
    %176 = vmatprep.subr.bf16.mxu0 0
    %177 = vmatpush1.bf16.msra.mxu0 0
    %178 = vmatprep.subr.bf16.mxu0 0
    %179 = vmatpush1.bf16.msra.mxu0 0
    %180 = vmatprep.mubr.bf16.mxu0 0
    %181 = vmatmul.mubr.bf16.gmra.mrb[0].mxu0 %v96
    %v182 = vpop.f32.mrb[0].mxu0
    %v183 = vadd.f32 %v71, %v182
    %v184 = vpop.f32.mrb[0].mxu0
    %v185 = vpop.f32.mrb[0].mxu0
    %v186 = vadd.f32 %v76, %v185
    %v187 = vpop.f32.mrb[0].mxu0
    %188 = vmatprep.mubr.bf16.mxu0 0
    %189 = vmatmul.mubr.bf16.gmra.mrb[0].mxu0 %v97
    %v190 = vpop.f32.mrb[0].mxu0
    %v191 = vadd.f32 %v81, %v190
    %v192 = vpop.f32.mrb[0].mxu0
    %v193 = vpop.f32.mrb[0].mxu0
    %v194 = vadd.f32 %v86, %v193
    %v195 = vpop.f32.mrb[0].mxu0
    %196 = vdwg.mxu0
    %v197 = vmax.f32 %v183, 0.0
    %v198 = vmax.f32 %v186, 0.0
    %v199 = vmax.f32 %v191, 0.0
    %v200 = vmax.f32 %v194, 0.0
    %v201 = vld [vmem:[%s3] sm:$0xf]
    %v202 = vld [vmem:[%s3 + $0x4] sm:$0xf]
    %v203 = vld [vmem:[%s3 + $0x8] sm:$0xf]
    %v204 = vld [vmem:[%s3 + $0xc] sm:$0xf]
    %v205 = vpack.c.bf16 %v198, %v197
    %v206 = vpack.c.bf16 %v200, %v199
    %v207 = vld [vmem:[%s4] sm:$0xff]
    %v208 = vld [vmem:[%s4 + $0x8] sm:$0xff]
    %v209 = vld [vmem:[%s4 + $0x10] sm:$0xff]
    %v210 = vld [vmem:[%s4 + $0x18] sm:$0xff]
    %212 = vset.pattern.permute.xlu0 0
    %213 = vperm.xlu0 %212, %v207
    %v214 = vpop.permute.xlu0 %213
    %217 = vset.pattern.permute.xlu0 0
    %218 = vperm.xlu0 %217, %v208
    %v219 = vpop.permute.xlu0 %218
    %222 = vset.pattern.permute.xlu0 0
    %223 = vperm.xlu0 %222, %v209
    %v224 = vpop.permute.xlu0 %223
    %227 = vset.pattern.permute.xlu0 0
    %228 = vperm.xlu0 %227, %v210
    %v229 = vpop.permute.xlu0 %228
    %v235 = vunpack.c.l.b16 %v201
    %v236 = vunpack.c.l.b16 %v202
    %v237 = vunpack.c.l.b16 %v203
    %v238 = vunpack.c.l.b16 %v204
    %v239 = vpack.c.b16 %v236, %v235
    %v240 = vpack.c.b16 %v238, %v237
    %vm241 = vcmask 261120
    %v243 = vsel %vm241, %v239, 0
    %v246 = vsel %vm241, %v240, 0
    %248 = vmatprep.subr.bf16.mxu0 0
    %249 = vmatpush1.bf16.msra.mxu0 %v205
    %250 = vmatprep.subr.bf16.mxu0 0
    %251 = vmatpush1.bf16.msra.mxu0 %v206
    %252 = vmatprep.subr.bf16.mxu0 0
    %253 = vmatpush1.bf16.msra.mxu0 0
    %254 = vmatprep.subr.bf16.mxu0 0
    %255 = vmatpush1.bf16.msra.mxu0 0
    %256 = vmatprep.subr.bf16.mxu0 0
    %257 = vmatpush1.bf16.msra.mxu0 0
    %258 = vmatprep.subr.bf16.mxu0 0
    %259 = vmatpush1.bf16.msra.mxu0 0
    %260 = vmatprep.subr.bf16.mxu0 0
    %261 = vmatpush1.bf16.msra.mxu0 0
    %262 = vmatprep.subr.bf16.mxu0 0
    %263 = vmatpush1.bf16.msra.mxu0 0
    %264 = vmatprep.subr.bf16.mxu0 0
    %265 = vmatpush1.bf16.msra.mxu0 0
    %266 = vmatprep.subr.bf16.mxu0 0
    %267 = vmatpush1.bf16.msra.mxu0 0
    %268 = vmatprep.subr.bf16.mxu0 0
    %269 = vmatpush1.bf16.msra.mxu0 0
    %270 = vmatprep.subr.bf16.mxu0 0
    %271 = vmatpush1.bf16.msra.mxu0 0
    %272 = vmatprep.subr.bf16.mxu0 0
    %273 = vmatpush1.bf16.msra.mxu0 0
    %274 = vmatprep.subr.bf16.mxu0 0
    %275 = vmatpush1.bf16.msra.mxu0 0
    %276 = vmatprep.subr.bf16.mxu0 0
    %277 = vmatpush1.bf16.msra.mxu0 0
    %278 = vmatprep.subr.bf16.mxu0 0
    %279 = vmatpush1.bf16.msra.mxu0 0
    %280 = vmatprep.mubr.bf16.mxu0 0
    %281 = vmatmul.mubr.bf16.gmra.mrb[0].mxu0 %v243
    %v282 = vpop.f32.mrb[0].mxu0
    %v283 = vadd.f32 %v214, %v282
    %v284 = vpop.f32.mrb[0].mxu0
    %v285 = vpop.f32.mrb[0].mxu0
    %v286 = vadd.f32 %v219, %v285
    %v287 = vpop.f32.mrb[0].mxu0
    %288 = vmatprep.mubr.bf16.mxu0 0
    %289 = vmatmul.mubr.bf16.gmra.mrb[0].mxu0 %v246
    %v290 = vpop.f32.mrb[0].mxu0
    %v291 = vadd.f32 %v224, %v290
    %v292 = vpop.f32.mrb[0].mxu0
    %v293 = vpop.f32.mrb[0].mxu0
    %v294 = vadd.f32 %v229, %v293
    %v295 = vpop.f32.mrb[0].mxu0
    %296 = vdwg.mxu0
    %v297 = vmax.f32 %v283, 0.0
    %v298 = vmax.f32 %v286, 0.0
    %v299 = vmax.f32 %v291, 0.0
    %v300 = vmax.f32 %v294, 0.0
    %v301 = vld [vmem:[%s5] sm:$0x1]
    %v302 = vpack.c.bf16 %v298, %v297
    %v303 = vpack.c.bf16 %v300, %v299
    %v304 = vld [vmem:[#allocation2] sm:$0x1]
    %306 = vset.pattern.permute.xlu0 0
    %307 = vperm.xlu0 %306, %v304
    %v308 = vpop.permute.xlu0 %307
    %v310 = vlaneseq
    %v311 = vshrl.u32 %v310, 7
    %v312 = vsub.s32 0, %v311
    %v313 = vrot.slane %v308, %v312
    %v315 = vsel %vm241, %v301, 0
    %317 = vmatprep.subr.bf16.mxu0 0
    %318 = vmatpush1.bf16.msra.mxu0 %v302
    %319 = vmatprep.subr.bf16.mxu0 0
    %320 = vmatpush1.bf16.msra.mxu0 %v303
    %321 = vmatprep.subr.bf16.mxu0 0
    %322 = vmatpush1.bf16.msra.mxu0 0
    %323 = vmatprep.subr.bf16.mxu0 0
    %324 = vmatpush1.bf16.msra.mxu0 0
    %325 = vmatprep.subr.bf16.mxu0 0
    %326 = vmatpush1.bf16.msra.mxu0 0
    %327 = vmatprep.subr.bf16.mxu0 0
    %328 = vmatpush1.bf16.msra.mxu0 0
    %329 = vmatprep.subr.bf16.mxu0 0
    %330 = vmatpush1.bf16.msra.mxu0 0
    %331 = vmatprep.subr.bf16.mxu0 0
    %332 = vmatpush1.bf16.msra.mxu0 0
    %333 = vmatprep.subr.bf16.mxu0 0
    %334 = vmatpush1.bf16.msra.mxu0 0
    %335 = vmatprep.subr.bf16.mxu0 0
    %336 = vmatpush1.bf16.msra.mxu0 0
    %337 = vmatprep.subr.bf16.mxu0 0
    %338 = vmatpush1.bf16.msra.mxu0 0
    %339 = vmatprep.subr.bf16.mxu0 0
    %340 = vmatpush1.bf16.msra.mxu0 0
    %341 = vmatprep.subr.bf16.mxu0 0
    %342 = vmatpush1.bf16.msra.mxu0 0
    %343 = vmatprep.subr.bf16.mxu0 0
    %344 = vmatpush1.bf16.msra.mxu0 0
    %345 = vmatprep.subr.bf16.mxu0 0
    %346 = vmatpush1.bf16.msra.mxu0 0
    %347 = vmatprep.subr.bf16.mxu0 0
    %348 = vmatpush1.bf16.msra.mxu0 0
    %349 = vmatprep.mubr.bf16.mxu0 0
    %350 = vmatmul.mubr.bf16.gmra.mrb[0].mxu0 %v315
    %v351 = vpop.f32.mrb[0].mxu0
    %v352 = vadd.f32 %v313, %v351
    %v353 = vpop.f32.mrb[0].mxu0
    %v354 = vpop.f32.mrb[0].mxu0
    %v355 = vpop.f32.mrb[0].mxu0
    %356 = vdwg.mxu0
    %357 = vst [vmem:[#allocation6] sm:$0x1] %v352
    // Predicated region
    $region34: #{tpu_custom_call.1} parent=1 // pred_check
      _
    $region35: #{tpu_custom_call.1} parent=1 // pred_check_branch
      %359 = sbr.rel (0) target = $region37
    $region36: #{tpu_custom_call.1} parent=1 // pred_region
      %s361 = ssub.s32 16, 16
      %362 = vsyncadd [#allocation5], %s361
      %s364 = sshll.u32 [#allocation6], 4
      %s365 = int_to_ptr.vmem [resolvable:$true] %s364
      %367 = dma.vmem_to_hbm [thread:$0]  %s365, 16, %s7, [#allocation5]
    $region37: #{tpu_custom_call.1} parent=1 // pred_fallthru
      _
    // Predicated region
    $region38: #{tpu_custom_call.1} parent=1 // pred_check
      _
    $region39: #{tpu_custom_call.1} parent=1 // pred_check_branch
      %369 = sbr.rel (0) target = $region41
    $region40: #{tpu_custom_call.1} parent=1 // pred_region
      %370 = dma.done [#allocation5], 16
    $region41: #{tpu_custom_call.1} parent=1 // pred_fallthru
      _
    %371 = vsyncpa [#allocation4], 1
    %372 = vsyncpa [#allocation5], 1

</llo_original>
